<compile_context>
chip_gen: v7x
topology: tpu7x:2x2x1
jax: 0.10.0
libtpu: 0.0.40
codegen_flags: <defaults>
</compile_context>

<pallas_src>
import functools

import jax
import jax.numpy as jnp
from jax.experimental import pallas as pl
from jax.experimental.pallas import tpu as pltpu

_SUBLANE = 8  # f32 sublane height


def _cdiv(a, b):
    return -(-a // b)


def _round_up(n, m):
    return ((n + m - 1) // m) * m


def _mlp_kernel(x_ref, w1_ref, b1_ref, w2_ref, b2_ref, o_ref):
    # Layer 1: Linear(obs -> hidden) + ReLU (bias broadcasts over batch rows)
    h = jnp.dot(x_ref[...], w1_ref[...], preferred_element_type=jnp.float32)
    h = jnp.maximum(h + b1_ref[...], 0.0)
    # Layer 2: Linear(hidden -> n_actions); narrow store, writeback bounded to B rows
    o_ref[...] = jnp.dot(h, w2_ref[...], preferred_element_type=jnp.float32) + b2_ref[...]


@functools.partial(jax.jit, static_argnames=("block_b",))
def net_forward(x, w1, b1, w2, b2, *, block_b=4096):
    """Pallas implementation of Net.forward.

    x : [B, obs_size] float32
    w1: [obs_size, hidden_size]   b1: [1, hidden_size]
    w2: [hidden_size, n_actions]  b2: [1, n_actions]
    returns [B, n_actions] float32
    """
    B, obs = x.shape
    hidden = w1.shape[1]
    n_actions = w2.shape[1]
    assert b1.shape == (1, hidden), "b1 must be 2-D [1, hidden_size]"
    assert b2.shape == (1, n_actions), "b2 must be 2-D [1, n_actions]"

    # Tile selection:
    #  * balanced tiles (multiple of the 8-row f32 sublane),
    #  * at least 2 grid steps when the batch is big enough, so both v7x
    #    TensorCores get work under dimension_semantics=("parallel",).
    min_steps = 2 if B >= 2 * _SUBLANE else 1
    n_steps = max(_cdiv(B, block_b), min_steps)
    tb = _round_up(_cdiv(B, n_steps), _SUBLANE)
    grid = (_cdiv(B, tb),)  # ragged final block handled by Pallas bounded DMA

    return pl.pallas_call(
        _mlp_kernel,
        out_shape=jax.ShapeDtypeStruct((B, n_actions), jnp.float32),
        grid=grid,
        in_specs=[
            pl.BlockSpec((tb, obs), lambda i: (i, 0)),          # x tile, pipelined over batch
            pl.BlockSpec((obs, hidden), lambda i: (0, 0)),      # weights: constant block ->
            pl.BlockSpec((1, hidden), lambda i: (0, 0)),        #   fetched once, never re-DMA'd
            pl.BlockSpec((hidden, n_actions), lambda i: (0, 0)),
            pl.BlockSpec((1, n_actions), lambda i: (0, 0)),
        ],
        out_specs=pl.BlockSpec((tb, n_actions), lambda i: (i, 0)),  # narrow writeback, no slice
        compiler_params=pltpu.CompilerParams(
            dimension_semantics=("parallel",),  # megacore shards the batch grid on v7x
            # NOTE: raise vmem_limit_bytes here if block_b is pushed beyond ~4096
            # (double-buffered x + out is ~2 KiB per row after lane padding).
        ),
    )(x, w1, b1, w2, b2)


if __name__ == "__main__":
    obs_size, hidden_size, n_actions = 8, 32, 4
    batch = 67  # not a multiple of 8 -> exercises the ragged final block + 2-step grid

    key = jax.random.PRNGKey(0)
    kx, k1, k2, k3, k4 = jax.random.split(key, 5)

    x = jax.random.normal(kx, (batch, obs_size), jnp.float32)

    # nn.Linear-style uniform(-1/sqrt(fan_in), 1/sqrt(fan_in)) init, stored
    # pre-transposed as [in_features, out_features].
    bound1 = 1.0 / jnp.sqrt(obs_size)
    bound2 = 1.0 / jnp.sqrt(hidden_size)
    w1 = jax.random.uniform(k1, (obs_size, hidden_size), jnp.float32, -bound1, bound1)
    b1 = jax.random.uniform(k2, (1, hidden_size), jnp.float32, -bound1, bound1)
    w2 = jax.random.uniform(k3, (hidden_size, n_actions), jnp.float32, -bound2, bound2)
    b2 = jax.random.uniform(k4, (1, n_actions), jnp.float32, -bound2, bound2)

    out = jax.block_until_ready(net_forward(x, w1, b1, w2, b2))

    # Reference check in plain JAX (same math as the PyTorch module).
    ref = jnp.maximum(x @ w1 + b1, 0.0) @ w2 + b2
    assert out.shape == (batch, n_actions)
    assert jnp.allclose(out, ref, atol=1e-5), "mismatch vs reference"

    print("KERNEL_OK")
</pallas_src>

<mosaic_0001>
module attributes {stable_mosaic.version = 11 : i64} {
  func.func @_mlp_kernel(%arg0: i32, %arg1: memref<40x8xf32, #tpu.memory_space<vmem>>, %arg2: memref<8x32xf32, #tpu.memory_space<vmem>>, %arg3: memref<1x32xf32, #tpu.memory_space<vmem>>, %arg4: memref<32x4xf32, #tpu.memory_space<vmem>>, %arg5: memref<1x4xf32, #tpu.memory_space<vmem>>, %arg6: memref<40x4xf32, #tpu.memory_space<vmem>>) attributes {dimension_semantics = [#tpu.dimension_semantics<parallel>], iteration_bounds = array<i64: 2>, scalar_prefetch = 0 : i64, scratch_operands = 0 : i64, tpu.core_type = #tpu.core_type<tc>, window_params = [{transform_indices = @transform_0, window_bounds = array<i64: 40, 8>}, {pipeline_mode = #tpu.pipeline_mode<synchronous>, transform_indices = @transform_1, window_bounds = array<i64: 8, 32>}, {pipeline_mode = #tpu.pipeline_mode<synchronous>, transform_indices = @transform_2, window_bounds = array<i64: 1, 32>}, {pipeline_mode = #tpu.pipeline_mode<synchronous>, transform_indices = @transform_3, window_bounds = array<i64: 32, 4>}, {pipeline_mode = #tpu.pipeline_mode<synchronous>, transform_indices = @transform_4, window_bounds = array<i64: 1, 4>}, {transform_indices = @transform_5, window_bounds = array<i64: 40, 4>}]} {
    %c0 = arith.constant 0 : index
    %c0_0 = arith.constant 0 : index
    %0 = vector.load %arg1[%c0, %c0_0] : memref<40x8xf32, #tpu.memory_space<vmem>>, vector<40x8xf32>
    %c0_1 = arith.constant 0 : index
    %c0_2 = arith.constant 0 : index
    %1 = vector.load %arg2[%c0_1, %c0_2] : memref<8x32xf32, #tpu.memory_space<vmem>>, vector<8x32xf32>
    %cst = arith.constant dense<0.000000e+00> : vector<40x32xf32>
    %2 = tpu.matmul %0, %1, %cst {dimension_numbers = #tpu.dot_dimension_numbers<[1], [0], [0], [1], [0, 0, 1, 1], [], []>} : vector<40x8xf32>, vector<8x32xf32>, vector<40x32xf32> -> vector<40x32xf32>
    %c0_3 = arith.constant 0 : index
    %c0_4 = arith.constant 0 : index
    %3 = vector.load %arg3[%c0_3, %c0_4] : memref<1x32xf32, #tpu.memory_space<vmem>>, vector<1x32xf32>
    %4 = vector.broadcast %3 : vector<1x32xf32> to vector<40x32xf32>
    %5 = arith.addf %2, %4 : vector<40x32xf32>
    %cst_5 = arith.constant 0.000000e+00 : f32
    %6 = vector.broadcast %cst_5 : f32 to vector<40x32xf32>
    %7 = arith.maximumf %5, %6 : vector<40x32xf32>
    %c0_6 = arith.constant 0 : index
    %c0_7 = arith.constant 0 : index
    %8 = vector.load %arg4[%c0_6, %c0_7] : memref<32x4xf32, #tpu.memory_space<vmem>>, vector<32x4xf32>
    %cst_8 = arith.constant dense<0.000000e+00> : vector<40x4xf32>
    %9 = tpu.matmul %7, %8, %cst_8 {dimension_numbers = #tpu.dot_dimension_numbers<[1], [0], [0], [1], [0, 0, 1, 1], [], []>} : vector<40x32xf32>, vector<32x4xf32>, vector<40x4xf32> -> vector<40x4xf32>
    %c0_9 = arith.constant 0 : index
    %c0_10 = arith.constant 0 : index
    %10 = vector.load %arg5[%c0_9, %c0_10] : memref<1x4xf32, #tpu.memory_space<vmem>>, vector<1x4xf32>
    %11 = vector.broadcast %10 : vector<1x4xf32> to vector<40x4xf32>
    %12 = arith.addf %9, %11 : vector<40x4xf32>
    %c0_11 = arith.constant 0 : index
    %c0_12 = arith.constant 0 : index
    %13 = vector.load %arg6[%c0_11, %c0_12] : memref<40x4xf32, #tpu.memory_space<vmem>>, vector<40x4xf32>
    tpu.vector_store %arg6[%c0_11, %c0_12], %12 {strides = array<i32>} : memref<40x4xf32, #tpu.memory_space<vmem>>, vector<40x4xf32>,
    return
  }
  func.func @transform_0(%arg0: i32) -> (i32, i32) {
    %c0_i32 = arith.constant 0 : i32
    %c0_i32_0 = arith.constant 0 : i32
    return %arg0, %c0_i32 : i32, i32
  }
  func.func @transform_1(%arg0: i32) -> (i32, i32) {
    %c0_i32 = arith.constant 0 : i32
    %c0_i32_0 = arith.constant 0 : i32
    %c0_i32_1 = arith.constant 0 : i32
    return %c0_i32, %c0_i32_0 : i32, i32
  }
  func.func @transform_2(%arg0: i32) -> (i32, i32) {
    %c0_i32 = arith.constant 0 : i32
    %c0_i32_0 = arith.constant 0 : i32
    %c0_i32_1 = arith.constant 0 : i32
    return %c0_i32, %c0_i32_0 : i32, i32
  }
  func.func @transform_3(%arg0: i32) -> (i32, i32) {
    %c0_i32 = arith.constant 0 : i32
    %c0_i32_0 = arith.constant 0 : i32
    %c0_i32_1 = arith.constant 0 : i32
    return %c0_i32, %c0_i32_0 : i32, i32
  }
  func.func @transform_4(%arg0: i32) -> (i32, i32) {
    %c0_i32 = arith.constant 0 : i32
    %c0_i32_0 = arith.constant 0 : i32
    %c0_i32_1 = arith.constant 0 : i32
    return %c0_i32, %c0_i32_0 : i32, i32
  }
  func.func @transform_5(%arg0: i32) -> (i32, i32) {
    %c0_i32 = arith.constant 0 : i32
    %c0_i32_0 = arith.constant 0 : i32
    return %arg0, %c0_i32 : i32, i32
  }
}

</mosaic_0001>

<llo_original>
// kernel: net_forward.1
$region0: #{net_forward.1}
  #allocation0 [shape = 'u32[]', space=smem, size = 0x4, offset = 0x4, fixed_abs, tag = 'smem constant byte address 0x4 - core index']
  #allocation1 [shape = 'u32[144,128]{1,0:T(1,128)}', space=vmem, size = 0x12000, scoped, tag = 'internal scratch']
  %s0 = inlined_call_operand.vmem [shape: f32[67,8], index: 0, kind: input, shape index: {}]
  %s1 = inlined_call_operand.vmem [shape: f32[8,32], index: 1, kind: input, shape index: {}]
  %s2 = inlined_call_operand.vmem [shape: f32[1,32], index: 2, kind: input, shape index: {}]
  %s3 = inlined_call_operand.vmem [shape: f32[32,4], index: 3, kind: input, shape index: {}]
  %s4 = inlined_call_operand.vmem [shape: f32[1,4], index: 4, kind: input, shape index: {}]
  %s5 = inlined_call_operand.vmem [shape: f32[67,4], index: 5, kind: output, shape index: {}]
  %s6 = sld [smem:[#allocation0]]
  $region101: #{net_forward.1} parent=0
    _
  %s8 = ssub.s32 1, %s6
  %s9 = scalar_select 0, %s8, %s6
  $region1: #{net_forward.1} parent=0
    #allocation2 [shape = 'u8[40960]{0}', space=vmem, size = 0xa000, scoped, tag = 'output window, operand 0']
    loop: start=0, step=1, limit=4
    $region2: #{net_forward.1} parent=1 // loop_pre_header
      _
    $region3: #{net_forward.1} parent=1 // loop_header
      %s11 = sphi 0, %s15
      %p12 = scmp.ge.s32.totalorder %s11, 4
      %s21 = sphi 0, %s23
      %s24 = sphi 0, %s21
      %s25 = sphi 0, %s24
      %s41 = sphi 0, %s25
      %s45 = sphi 0, %s45
      %s47 = sphi 0, %s45
      %s48 = sphi 0, %s47
      %s62 = sphi 0, %s48
      %s66 = sphi 0, %s66
      %s68 = sphi 0, %s66
      %s69 = sphi 0, %s68
      %s83 = sphi 0, %s69
      %s87 = sphi 0, %s87
      %s89 = sphi 0, %s87
      %s90 = sphi 0, %s89
      %s104 = sphi 0, %s90
      %s108 = sphi 0, %s108
      %s110 = sphi 0, %s108
      %s111 = sphi 0, %s110
      %s125 = sphi 0, %s111
      %s131 = sphi 0, %s133
      %s134 = sphi 0, %s131
      %s135 = sphi 0, %s134
      %s151 = sphi 0, %s135
    $region4: #{net_forward.1} parent=1 // loop_header_branch
      %14 = sbr.rel (%p12) target = $region8
    $region5: #{net_forward.1} parent=1 // loop_body
      %s16 = ssub.s32 %s11, 1
      %s17 = ssub.s32 %s11, 2
      %s18 = sadd.s32 %s11, 1
      %s19 = ssub.s32 %s11, %s18
      %p20 = scmp.eq.s32.totalorder %s19, 0
      %s22 = sadd.s32 %s21, 1
      %s23 = scalar_select %p20, %s21, %s22
      %p26 = pneg %p20
      %p27 = scmp.eq.s32.totalorder %s11, 1
      %p28 = por %p26, %p27
      %p29 = scmp.ne.s32.totalorder %s21, %s24
      %p30 = scmp.eq.s32.totalorder %s11, 0
      %p31 = por %p29, %p30
      %p32 = scmp.ne.s32.totalorder %s21, %s24
      %p33 = scmp.eq.s32.totalorder %s16, 1
      %p34 = por %p32, %p33
      %p35 = scmp.ne.s32.totalorder %s24, %s25
      %p36 = scmp.eq.s32.totalorder %s16, 0
      %p37 = por %p35, %p36
      %p38 = scmp.ne.s32.totalorder %s24, %s25
      %p39 = scmp.eq.s32.totalorder %s17, 1
      %p40 = por %p38, %p39
      %p42 = scmp.ne.s32.totalorder %s25, %s41
      %p43 = scmp.eq.s32.totalorder %s17, 0
      %p44 = por %p42, %p43
      %s46 = sadd.s32 %s45, 1
      %p49 = scmp.eq.s32.totalorder %s11, 1
      %p50 = scmp.ne.s32.totalorder %s45, %s47
      %p51 = scmp.eq.s32.totalorder %s11, 0
      %p52 = por %p50, %p51
      %p53 = scmp.ne.s32.totalorder %s45, %s47
      %p54 = scmp.eq.s32.totalorder %s16, 1
      %p55 = por %p53, %p54
      %p56 = scmp.ne.s32.totalorder %s47, %s48
      %p57 = scmp.eq.s32.totalorder %s16, 0
      %p58 = por %p56, %p57
      %p59 = scmp.ne.s32.totalorder %s47, %s48
      %p60 = scmp.eq.s32.totalorder %s17, 1
      %p61 = por %p59, %p60
      %p63 = scmp.ne.s32.totalorder %s48, %s62
      %p64 = scmp.eq.s32.totalorder %s17, 0
      %p65 = por %p63, %p64
      %s67 = sadd.s32 %s66, 1
      %p70 = scmp.eq.s32.totalorder %s11, 1
      %p71 = scmp.ne.s32.totalorder %s66, %s68
      %p72 = scmp.eq.s32.totalorder %s11, 0
      %p73 = por %p71, %p72
      %p74 = scmp.ne.s32.totalorder %s66, %s68
      %p75 = scmp.eq.s32.totalorder %s16, 1
      %p76 = por %p74, %p75
      %p77 = scmp.ne.s32.totalorder %s68, %s69
      %p78 = scmp.eq.s32.totalorder %s16, 0
      %p79 = por %p77, %p78
      %p80 = scmp.ne.s32.totalorder %s68, %s69
      %p81 = scmp.eq.s32.totalorder %s17, 1
      %p82 = por %p80, %p81
      %p84 = scmp.ne.s32.totalorder %s69, %s83
      %p85 = scmp.eq.s32.totalorder %s17, 0
      %p86 = por %p84, %p85
      %s88 = sadd.s32 %s87, 1
      %p91 = scmp.eq.s32.totalorder %s11, 1
      %p92 = scmp.ne.s32.totalorder %s87, %s89
      %p93 = scmp.eq.s32.totalorder %s11, 0
      %p94 = por %p92, %p93
      %p95 = scmp.ne.s32.totalorder %s87, %s89
      %p96 = scmp.eq.s32.totalorder %s16, 1
      %p97 = por %p95, %p96
      %p98 = scmp.ne.s32.totalorder %s89, %s90
      %p99 = scmp.eq.s32.totalorder %s16, 0
      %p100 = por %p98, %p99
      %p101 = scmp.ne.s32.totalorder %s89, %s90
      %p102 = scmp.eq.s32.totalorder %s17, 1
      %p103 = por %p101, %p102
      %p105 = scmp.ne.s32.totalorder %s90, %s104
      %p106 = scmp.eq.s32.totalorder %s17, 0
      %p107 = por %p105, %p106
      %s109 = sadd.s32 %s108, 1
      %p112 = scmp.eq.s32.totalorder %s11, 1
      %p113 = scmp.ne.s32.totalorder %s108, %s110
      %p114 = scmp.eq.s32.totalorder %s11, 0
      %p115 = por %p113, %p114
      %p116 = scmp.ne.s32.totalorder %s108, %s110
      %p117 = scmp.eq.s32.totalorder %s16, 1
      %p118 = por %p116, %p117
      %p119 = scmp.ne.s32.totalorder %s110, %s111
      %p120 = scmp.eq.s32.totalorder %s16, 0
      %p121 = por %p119, %p120
      %p122 = scmp.ne.s32.totalorder %s110, %s111
      %p123 = scmp.eq.s32.totalorder %s17, 1
      %p124 = por %p122, %p123
      %p126 = scmp.ne.s32.totalorder %s111, %s125
      %p127 = scmp.eq.s32.totalorder %s17, 0
      %p128 = por %p126, %p127
      %s129 = ssub.s32 %s11, %s18
      %p130 = scmp.eq.s32.totalorder %s129, 0
      %s132 = sadd.s32 %s131, 1
      %s133 = scalar_select %p130, %s131, %s132
      %p136 = pneg %p130
      %p137 = scmp.eq.s32.totalorder %s11, 1
      %p138 = por %p136, %p137
      %p139 = scmp.ne.s32.totalorder %s131, %s134
      %p140 = scmp.eq.s32.totalorder %s11, 0
      %p141 = por %p139, %p140
      %p142 = scmp.ne.s32.totalorder %s131, %s134
      %p143 = scmp.eq.s32.totalorder %s16, 1
      %p144 = por %p142, %p143
      %p145 = scmp.ne.s32.totalorder %s134, %s135
      %p146 = scmp.eq.s32.totalorder %s16, 0
      %p147 = por %p145, %p146
      %p148 = scmp.ne.s32.totalorder %s134, %s135
      %p149 = scmp.eq.s32.totalorder %s17, 1
      %p150 = por %p148, %p149
      %p152 = scmp.ne.s32.totalorder %s135, %s151
      %p153 = scmp.eq.s32.totalorder %s17, 0
      %p154 = por %p152, %p153
      %p155 = scmp.le.s32.totalorder 1, %s11
      %p156 = scmp.lt.s32.totalorder %s11, 3
      %p157 = pnand %p155, %p156
      %p158 = pneg %p157
      // Predicated region
      $region9: #{net_forward.1} parent=5 // pred_check
        _
      $region10: #{net_forward.1} parent=5 // pred_check_branch
        %160 = sbr.rel (%p157) target = $region12
      $region11: #{net_forward.1} parent=5 // pred_region
        %s161 = ssub.s32 %s11, 1
        // Predicated region
        $region13: #{net_forward.1} parent=11 // pred_check
          %p162 = pneg %p58
        $region14: #{net_forward.1} parent=11 // pred_check_branch
          %164 = sbr.rel (%p162) target = $region16
        $region15: #{net_forward.1} parent=11 // pred_region
          _
        $region16: #{net_forward.1} parent=11 // pred_fallthru
          _
        // Predicated region
        $region17: #{net_forward.1} parent=11 // pred_check
          %p165 = pneg %p79
        $region18: #{net_forward.1} parent=11 // pred_check_branch
          %167 = sbr.rel (%p165) target = $region20
        $region19: #{net_forward.1} parent=11 // pred_region
          _
        $region20: #{net_forward.1} parent=11 // pred_fallthru
          _
        // Predicated region
        $region21: #{net_forward.1} parent=11 // pred_check
          %p168 = pneg %p100
        $region22: #{net_forward.1} parent=11 // pred_check_branch
          %170 = sbr.rel (%p168) target = $region24
        $region23: #{net_forward.1} parent=11 // pred_region
          _
        $region24: #{net_forward.1} parent=11 // pred_fallthru
          _
        // Predicated region
        $region25: #{net_forward.1} parent=11 // pred_check
          %p171 = pneg %p121
        $region26: #{net_forward.1} parent=11 // pred_check_branch
          %173 = sbr.rel (%p171) target = $region28
        $region27: #{net_forward.1} parent=11 // pred_region
          _
        $region28: #{net_forward.1} parent=11 // pred_fallthru
          _
      $region12: #{net_forward.1} parent=5 // pred_fallthru
        _
      %p174 = scmp.lt.s32.totalorder %s11, 2
      // Predicated region
      $region29: #{net_forward.1} parent=5 // pred_check
        %p175 = pneg %p174
      $region30: #{net_forward.1} parent=5 // pred_check_branch
        %177 = sbr.rel (%p175) target = $region32
      $region31: #{net_forward.1} parent=5 // pred_region
        // Predicated region
        $region33: #{net_forward.1} parent=31 // pred_check
          %p178 = pneg %p31
        $region34: #{net_forward.1} parent=31 // pred_check_branch
          %180 = sbr.rel (%p178) target = $region36
        $region35: #{net_forward.1} parent=31 // pred_region
          %s181 = smul.u32 5, %s11
          %s182 = ssub.s32 9, %s181
          %p183 = scmp.lt.s32.totalorder %s182, 5
          %s184 = scalar_select %p183, %s182, 5
          %s185 = smul.u32 128, %s184
          %p186 = scmp.lt.s32.totalorder %s181, 8
          %s187 = scalar_select %p186, %s181, 8
          %s188 = smul.addr %s187, 8
          %s189 = scalar_lea.vmem %s0, %s188
          %s190 = smul.u32 5, %s11
          %s191 = ssub.s32 9, %s190
          %p192 = scmp.lt.s32.totalorder %s191, 5
          %s193 = scalar_select %p192, %s191, 5
          %s194 = smul.u32 128, %s193
        $region36: #{net_forward.1} parent=31 // pred_fallthru
          _
      $region32: #{net_forward.1} parent=5 // pred_fallthru
        _
      %p195 = scmp.le.s32.totalorder 1, %s11
      %p196 = scmp.lt.s32.totalorder %s11, 3
      %p197 = pnand %p195, %p196
      %p198 = pneg %p197
      // Predicated region
      $region37: #{net_forward.1} parent=5 // pred_check
        _
      $region38: #{net_forward.1} parent=5 // pred_check_branch
        %200 = sbr.rel (%p197) target = $region40
      $region39: #{net_forward.1} parent=5 // pred_region
        %s201 = ssub.s32 %s11, 1
        %s202 = smul.u32 5, %s16
        %s203 = ssub.s32 9, %s202
        %p204 = scmp.lt.s32.totalorder %s203, 5
        %s205 = scalar_select %p204, %s203, 5
        %s206 = smul.u32 128, %s205
        %p207 = scmp.lt.s32.totalorder %s202, 8
        %s208 = scalar_select %p207, %s202, 8
        %s209 = smul.addr %s208, 8
        %s210 = scalar_lea.vmem %s0, %s209
        %p211 = pneg %p37
        %p212 = pneg %p34
        %p213 = pneg %p58
        %p214 = pneg %p55
        %p215 = pneg %p79
        %p216 = pneg %p76
        %p217 = pneg %p100
        %p218 = pneg %p97
        %p219 = pneg %p121
        %p220 = pneg %p118
        %p221 = pneg %p147
        %p222 = pneg %p144
        %s223 = sand.u32 %s134, 1
        %s224 = sand.u32 %s134, 1
        %s225 = smul.addr %s224, 40
        %s226 = scalar_lea.vmem [#allocation2], %s225
        %s227 = smul.u32 5, %s16
        %s228 = ssub.s32 9, %s227
        %p229 = scmp.lt.s32.totalorder %s228, 5
        %s230 = scalar_select %p229, %s228, 5
        %s231 = smul.u32 128, %s230
        %p232 = scmp.lt.s32.totalorder %s227, 8
        %s233 = scalar_select %p232, %s227, 8
        %s234 = smul.addr %s233, 8
        %s235 = scalar_lea.vmem %s0, %s234
        %s236 = smul.u32 5, %s16
        %s237 = ssub.s32 9, %s236
        %p238 = scmp.lt.s32.totalorder %s237, 5
        %s239 = scalar_select %p238, %s237, 5
        %s240 = smul.u32 128, %s239
        %s241 = smul.u32 5, %s16
        %s242 = ssub.s32 9, %s241
        %p243 = scmp.lt.s32.totalorder %s242, 5
        %s244 = scalar_select %p243, %s242, 5
        %s245 = smul.u32 128, %s244
        %v246 = vld [vmem:[%s235] sm:$0xff]
        %v247 = vld [vmem:[%s235 + $0x8] sm:$0xff]
        %v248 = vld [vmem:[%s235 + $0x10] sm:$0xff]
        %v249 = vld [vmem:[%s235 + $0x18] sm:$0xff]
        %v250 = vld [vmem:[%s235 + $0x20] sm:$0xff]
        %v251 = vld [vmem:[%s1] sm:$0xff]
        %v252 = vld [vmem:[%s2] sm:$0x1]
        %v254 = vlaneseq
        %v255 = vshrl.u32 %v254, 7
        %v256 = vsub.s32 0, %v255
        %v257 = vrot.slane %v252, %v256
        %vm259 = vcmask 64512
        %v261 = vsel %vm259, %v246, 0
        %v264 = vsel %vm259, %v247, 0
        %v267 = vsel %vm259, %v248, 0
        %v270 = vsel %vm259, %v249, 0
        %v273 = vsel %vm259, %v250, 0
        %275 = vmatprep.subr.mxu0 0.0
        %276 = vmatpush1.msra.mxu0 %v251
        %277 = vmatprep.subr.mxu0 0.0
        %278 = vmatpush1.msra.mxu0 0.0
        %279 = vmatprep.subr.mxu0 0.0
        %280 = vmatpush1.msra.mxu0 0.0
        %281 = vmatprep.subr.mxu0 0.0
        %282 = vmatpush1.msra.mxu0 0.0
        %283 = vmatprep.subr.mxu0 0.0
        %284 = vmatpush1.msra.mxu0 0.0
        %285 = vmatprep.subr.mxu0 0.0
        %286 = vmatpush1.msra.mxu0 0.0
        %287 = vmatprep.subr.mxu0 0.0
        %288 = vmatpush1.msra.mxu0 0.0
        %289 = vmatprep.subr.mxu0 0.0
        %290 = vmatpush1.msra.mxu0 0.0
        %291 = vmatprep.subr.mxu0 0.0
        %292 = vmatpush1.msra.mxu0 0.0
        %293 = vmatprep.subr.mxu0 0.0
        %294 = vmatpush1.msra.mxu0 0.0
        %295 = vmatprep.subr.mxu0 0.0
        %296 = vmatpush1.msra.mxu0 0.0
        %297 = vmatprep.subr.mxu0 0.0
        %298 = vmatpush1.msra.mxu0 0.0
        %299 = vmatprep.subr.mxu0 0.0
        %300 = vmatpush1.msra.mxu0 0.0
        %301 = vmatprep.subr.mxu0 0.0
        %302 = vmatpush1.msra.mxu0 0.0
        %303 = vmatprep.subr.mxu0 0.0
        %304 = vmatpush1.msra.mxu0 0.0
        %305 = vmatprep.subr.mxu0 0.0
        %306 = vmatpush1.msra.mxu0 0.0
        %307 = vmatprep.subr.mxu0 0.0
        %308 = vmatpush1.msra.mxu0 0.0
        %309 = vmatprep.subr.mxu0 0.0
        %310 = vmatpush1.msra.mxu0 0.0
        %311 = vmatprep.subr.mxu0 0.0
        %312 = vmatpush1.msra.mxu0 0.0
        %313 = vmatprep.subr.mxu0 0.0
        %314 = vmatpush1.msra.mxu0 0.0
        %315 = vmatprep.subr.mxu0 0.0
        %316 = vmatpush1.msra.mxu0 0.0
        %317 = vmatprep.subr.mxu0 0.0
        %318 = vmatpush1.msra.mxu0 0.0
        %319 = vmatprep.subr.mxu0 0.0
        %320 = vmatpush1.msra.mxu0 0.0
        %321 = vmatprep.subr.mxu0 0.0
        %322 = vmatpush1.msra.mxu0 0.0
        %323 = vmatprep.subr.mxu0 0.0
        %324 = vmatpush1.msra.mxu0 0.0
        %325 = vmatprep.subr.mxu0 0.0
        %326 = vmatpush1.msra.mxu0 0.0
        %327 = vmatprep.subr.mxu0 0.0
        %328 = vmatpush1.msra.mxu0 0.0
        %329 = vmatprep.subr.mxu0 0.0
        %330 = vmatpush1.msra.mxu0 0.0
        %331 = vmatprep.subr.mxu0 0.0
        %332 = vmatpush1.msra.mxu0 0.0
        %333 = vmatprep.subr.mxu0 0.0
        %334 = vmatpush1.msra.mxu0 0.0
        %335 = vmatprep.subr.mxu0 0.0
        %336 = vmatpush1.msra.mxu0 0.0
        %337 = vmatprep.subr.mxu0 0.0
        %338 = vmatpush1.msra.mxu0 0.0
        %339 = vmatprep.mubr.f32.mxu0 0.0
        %340 = vmatmul.mubr.f32.gmra.mrb[0].mxu0 %v261
        %v341 = vpop.f32.mrb[0].mxu0
        %v342 = vadd.f32 %v257, %v341
        %v343 = vpop.f32.mrb[0].mxu0
        %344 = vmatprep.mubr.f32.mxu0 0.0
        %345 = vmatmul.mubr.f32.gmra.mrb[0].mxu0 %v264
        %v346 = vpop.f32.mrb[0].mxu0
        %v347 = vadd.f32 %v257, %v346
        %v348 = vpop.f32.mrb[0].mxu0
        %349 = vmatprep.mubr.f32.mxu0 0.0
        %350 = vmatmul.mubr.f32.gmra.mrb[0].mxu0 %v267
        %v351 = vpop.f32.mrb[0].mxu0
        %v352 = vadd.f32 %v257, %v351
        %v353 = vpop.f32.mrb[0].mxu0
        %354 = vmatprep.mubr.f32.mxu0 0.0
        %355 = vmatmul.mubr.f32.gmra.mrb[0].mxu0 %v270
        %v356 = vpop.f32.mrb[0].mxu0
        %v357 = vadd.f32 %v257, %v356
        %v358 = vpop.f32.mrb[0].mxu0
        %359 = vmatprep.mubr.f32.mxu0 0.0
        %360 = vmatmul.mubr.f32.gmra.mrb[0].mxu0 %v273
        %v361 = vpop.f32.mrb[0].mxu0
        %v362 = vadd.f32 %v257, %v361
        %v363 = vpop.f32.mrb[0].mxu0
        %364 = vdwg.mxu0
        %v365 = vmax.f32 %v342, 0.0
        %v366 = vmax.f32 %v347, 0.0
        %v367 = vmax.f32 %v352, 0.0
        %v368 = vmax.f32 %v357, 0.0
        %v369 = vmax.f32 %v362, 0.0
        %v370 = vld [vmem:[%s3] sm:$0xff]
        %v371 = vld [vmem:[%s3 + $0x8] sm:$0xff]
        %v372 = vld [vmem:[%s3 + $0x10] sm:$0xff]
        %v373 = vld [vmem:[%s3 + $0x18] sm:$0xff]
        %v374 = vld [vmem:[%s4] sm:$0x1]
        %v376 = vlaneseq
        %v377 = vshrl.u32 %v376, 7
        %v378 = vsub.s32 0, %v377
        %v379 = vrot.slane %v374, %v378
        %vm381 = vcmask 261120
        %v383 = vsel %vm381, %v365, 0
        %v386 = vsel %vm381, %v366, 0
        %v389 = vsel %vm381, %v367, 0
        %v392 = vsel %vm381, %v368, 0
        %v395 = vsel %vm381, %v369, 0
        %397 = vmatprep.subr.mxu0 0.0
        %398 = vmatpush1.msra.mxu0 %v370
        %399 = vmatprep.subr.mxu0 0.0
        %400 = vmatpush1.msra.mxu0 %v371
        %401 = vmatprep.subr.mxu0 0.0
        %402 = vmatpush1.msra.mxu0 %v372
        %403 = vmatprep.subr.mxu0 0.0
        %404 = vmatpush1.msra.mxu0 %v373
        %405 = vmatprep.subr.mxu0 0.0
        %406 = vmatpush1.msra.mxu0 0.0
        %407 = vmatprep.subr.mxu0 0.0
        %408 = vmatpush1.msra.mxu0 0.0
        %409 = vmatprep.subr.mxu0 0.0
        %410 = vmatpush1.msra.mxu0 0.0
        %411 = vmatprep.subr.mxu0 0.0
        %412 = vmatpush1.msra.mxu0 0.0
        %413 = vmatprep.subr.mxu0 0.0
        %414 = vmatpush1.msra.mxu0 0.0
        %415 = vmatprep.subr.mxu0 0.0
        %416 = vmatpush1.msra.mxu0 0.0
        %417 = vmatprep.subr.mxu0 0.0
        %418 = vmatpush1.msra.mxu0 0.0
        %419 = vmatprep.subr.mxu0 0.0
        %420 = vmatpush1.msra.mxu0 0.0
        %421 = vmatprep.subr.mxu0 0.0
        %422 = vmatpush1.msra.mxu0 0.0
        %423 = vmatprep.subr.mxu0 0.0
        %424 = vmatpush1.msra.mxu0 0.0
        %425 = vmatprep.subr.mxu0 0.0
        %426 = vmatpush1.msra.mxu0 0.0
        %427 = vmatprep.subr.mxu0 0.0
        %428 = vmatpush1.msra.mxu0 0.0
        %429 = vmatprep.subr.mxu0 0.0
        %430 = vmatpush1.msra.mxu0 0.0
        %431 = vmatprep.subr.mxu0 0.0
        %432 = vmatpush1.msra.mxu0 0.0
        %433 = vmatprep.subr.mxu0 0.0
        %434 = vmatpush1.msra.mxu0 0.0
        %435 = vmatprep.subr.mxu0 0.0
        %436 = vmatpush1.msra.mxu0 0.0
        %437 = vmatprep.subr.mxu0 0.0
        %438 = vmatpush1.msra.mxu0 0.0
        %439 = vmatprep.subr.mxu0 0.0
        %440 = vmatpush1.msra.mxu0 0.0
        %441 = vmatprep.subr.mxu0 0.0
        %442 = vmatpush1.msra.mxu0 0.0
        %443 = vmatprep.subr.mxu0 0.0
        %444 = vmatpush1.msra.mxu0 0.0
        %445 = vmatprep.subr.mxu0 0.0
        %446 = vmatpush1.msra.mxu0 0.0
        %447 = vmatprep.subr.mxu0 0.0
        %448 = vmatpush1.msra.mxu0 0.0
        %449 = vmatprep.subr.mxu0 0.0
        %450 = vmatpush1.msra.mxu0 0.0
        %451 = vmatprep.subr.mxu0 0.0
        %452 = vmatpush1.msra.mxu0 0.0
        %453 = vmatprep.subr.mxu0 0.0
        %454 = vmatpush1.msra.mxu0 0.0
        %455 = vmatprep.subr.mxu0 0.0
        %456 = vmatpush1.msra.mxu0 0.0
        %457 = vmatprep.subr.mxu0 0.0
        %458 = vmatpush1.msra.mxu0 0.0
        %459 = vmatprep.subr.mxu0 0.0
        %460 = vmatpush1.msra.mxu0 0.0
        %461 = vmatprep.mubr.f32.mxu0 0.0
        %462 = vmatmul.mubr.f32.gmra.mrb[0].mxu0 %v383
        %v463 = vpop.f32.mrb[0].mxu0
        %v464 = vadd.f32 %v379, %v463
        %v465 = vpop.f32.mrb[0].mxu0
        %466 = vmatprep.mubr.f32.mxu0 0.0
        %467 = vmatmul.mubr.f32.gmra.mrb[0].mxu0 %v386
        %v468 = vpop.f32.mrb[0].mxu0
        %v469 = vadd.f32 %v379, %v468
        %v470 = vpop.f32.mrb[0].mxu0
        %471 = vmatprep.mubr.f32.mxu0 0.0
        %472 = vmatmul.mubr.f32.gmra.mrb[0].mxu0 %v389
        %v473 = vpop.f32.mrb[0].mxu0
        %v474 = vadd.f32 %v379, %v473
        %v475 = vpop.f32.mrb[0].mxu0
        %476 = vmatprep.mubr.f32.mxu0 0.0
        %477 = vmatmul.mubr.f32.gmra.mrb[0].mxu0 %v392
        %v478 = vpop.f32.mrb[0].mxu0
        %v479 = vadd.f32 %v379, %v478
        %v480 = vpop.f32.mrb[0].mxu0
        %481 = vmatprep.mubr.f32.mxu0 0.0
        %482 = vmatmul.mubr.f32.gmra.mrb[0].mxu0 %v395
        %v483 = vpop.f32.mrb[0].mxu0
        %v484 = vadd.f32 %v379, %v483
        %v485 = vpop.f32.mrb[0].mxu0
        %486 = vdwg.mxu0
        %vm487 = vcmask 31744
        %488 = vst.msk [vmem:[%s226] sm:$0xff] %vm487, %v464
        %489 = vst.msk [vmem:[%s226 + $0x8] sm:$0xff] %vm487, %v469
        %490 = vst.msk [vmem:[%s226 + $0x10] sm:$0xff] %vm487, %v474
        %491 = vst.msk [vmem:[%s226 + $0x18] sm:$0xff] %vm487, %v479
        %492 = vst.msk [vmem:[%s226 + $0x20] sm:$0xff] %vm487, %v484
        %s493 = sand.u32 %s134, 1
        %s494 = sand.u32 %s134, 1
        %s495 = smul.addr %s494, 40
        %s496 = scalar_lea.vmem [#allocation2], %s495
        // Predicated region
        $region41: #{net_forward.1} parent=39 // pred_check
          %p497 = pneg %p144
        $region42: #{net_forward.1} parent=39 // pred_check_branch
          %499 = sbr.rel (%p497) target = $region44
        $region43: #{net_forward.1} parent=39 // pred_region
          %s500 = smul.u32 5, %s16
          %s501 = ssub.s32 9, %s500
          %p502 = scmp.lt.s32.totalorder %s501, 5
          %s503 = scalar_select %p502, %s501, 5
          %s504 = smul.u32 128, %s503
          %p505 = scmp.ne.s32.totalorder 0, %s504
          %s506 = smul.addr %s500, 8
          %s507 = scalar_lea.vmem %s5, %s506
          // Predicated region
          $region45: #{net_forward.1} parent=43 // pred_check
            %p508 = pneg %p505
          $region46: #{net_forward.1} parent=43 // pred_check_branch
            %510 = sbr.rel (%p508) target = $region48
          $region47: #{net_forward.1} parent=43 // pred_region
            // Predicated region
            $region49: #{net_forward.1} parent=47 // pred_check
              _
            $region50: #{net_forward.1} parent=47 // pred_check_branch
              %512 = sbr.rel (0) target = $region52
            $region51: #{net_forward.1} parent=47 // pred_region
              // Predicated region
              $region71: #{net_forward.1} parent=51 // pred_check
                _
              $region72: #{net_forward.1} parent=51 // pred_check_branch
                %570 = sbr.rel (0) target = $region74
              $region73: #{net_forward.1} parent=51 // pred_region
                %s571 = sdiv.u32.pop %s503, 5
                %s572 = srem.u32.pop %s503, 5
                // While loop
                $region75: #{net_forward.1} parent=73 // loop_pre_header
                  _
                $region76: #{net_forward.1} parent=73 // loop_header
                  %s574 = sphi 0, %s576
                  %p575 = scmp.ge.s32.totalorder %s574, %s571
                  %s579 = sphi 0, %s594
                  %s580 = sphi %s496, %s597
                  %s581 = sphi %s507, %s598
                $region77: #{net_forward.1} parent=73 // loop_header_branch
                  %578 = sbr.rel (%p575) target = $region81
                $region78: #{net_forward.1} parent=73 // loop_body
                  %v582 = vld [vmem:[%s580] sm:$0xff]
                  %583 = vst [vmem:[%s581] sm:$0xff] %v582
                  %v584 = vld [vmem:[%s580 + $0x8] sm:$0xff]
                  %585 = vst [vmem:[%s581 + $0x8] sm:$0xff] %v584
                  %v586 = vld [vmem:[%s580 + $0x10] sm:$0xff]
                  %587 = vst [vmem:[%s581 + $0x10] sm:$0xff] %v586
                  %v588 = vld [vmem:[%s580 + $0x18] sm:$0xff]
                  %589 = vst [vmem:[%s581 + $0x18] sm:$0xff] %v588
                  %v590 = vld [vmem:[%s580 + $0x20] sm:$0xff]
                  %591 = vst [vmem:[%s581 + $0x20] sm:$0xff] %v590
                  %s592 = sadd.s32 1, %s579
                  %p593 = scmp.ge.s32.totalorder %s592, %s571
                  %s594 = scalar_select %p593, 0, %s592
                  %s595 = smul.u32 %s594, 40
                  %s596 = smul.u32 %s594, 40
                  %s597 = scalar_lea.vmem %s496, %s595 [#allocation2]
                  %s598 = scalar_lea.vmem %s507, %s596
                $region79: #{net_forward.1} parent=73 // loop_footer
                  %s576 = sadd.s32 %s574, 1
                $region80: #{net_forward.1} parent=73 // loop_footer_branch
                  %573 = sbr.rel target = $region76
                $region81: #{net_forward.1} parent=73 // loop_exit
                  _
                %s599 = sdiv.u32.pop %s503, 5
                %s600 = srem.u32.pop %s503, 5
                %s601 = smul.u32 %s599, 5
                %s602 = smul.u32 8, %s601
                %s603 = scalar_lea.vmem %s496, %s602 [#allocation2]
                %s604 = smul.u32 8, %s601
                %s605 = scalar_lea.vmem %s507, %s604
                // While loop
                $region82: #{net_forward.1} parent=73 // loop_pre_header
                  _
                $region83: #{net_forward.1} parent=73 // loop_header
                  %s607 = sphi 0, %s609
                  %p608 = scmp.ge.s32.totalorder %s607, %s600
                  %s612 = sphi 0, %s619
                  %s613 = sphi %s603, %s622
                  %s614 = sphi %s605, %s623
                $region84: #{net_forward.1} parent=73 // loop_header_branch
                  %611 = sbr.rel (%p608) target = $region88
                $region85: #{net_forward.1} parent=73 // loop_body
                  %v615 = vld [vmem:[%s613] sm:$0xff]
                  %616 = vst [vmem:[%s614] sm:$0xff] %v615
                  %s617 = sadd.s32 1, %s612
                  %p618 = scmp.ge.s32.totalorder %s617, %s600
                  %s619 = scalar_select %p618, 0, %s617
                  %s620 = smul.u32 %s619, 8
                  %s621 = smul.u32 %s619, 8
                  %s622 = scalar_lea.vmem %s603, %s620 [#allocation2]
                  %s623 = scalar_lea.vmem %s605, %s621
                $region86: #{net_forward.1} parent=73 // loop_footer
                  %s609 = sadd.s32 %s607, 1
                $region87: #{net_forward.1} parent=73 // loop_footer_branch
                  %606 = sbr.rel target = $region83
                $region88: #{net_forward.1} parent=73 // loop_exit
                  _
              $region74: #{net_forward.1} parent=51 // pred_fallthru
                _
              // Predicated region
              $region89: #{net_forward.1} parent=51 // pred_check
                _
              $region90: #{net_forward.1} parent=51 // pred_check_branch
                %625 = sbr.rel target = $region92
              $region91: #{net_forward.1} parent=51 // pred_region
                _
              $region92: #{net_forward.1} parent=51 // pred_fallthru
                _
            $region52: #{net_forward.1} parent=47 // pred_fallthru
              _
            // Predicated region
            $region53: #{net_forward.1} parent=47 // pred_check
              _
            $region54: #{net_forward.1} parent=47 // pred_check_branch
              %514 = sbr.rel target = $region56
            $region55: #{net_forward.1} parent=47 // pred_region
              %s516 = sdiv.u32.pop %s503, 5
              %s517 = srem.u32.pop %s503, 5
              // While loop
              $region57: #{net_forward.1} parent=55 // loop_pre_header
                _
              $region58: #{net_forward.1} parent=55 // loop_header
                %s519 = sphi 0, %s521
                %p520 = scmp.ge.s32.totalorder %s519, %s516
                %s524 = sphi 0, %s539
                %s525 = sphi %s496, %s542
                %s526 = sphi %s507, %s543
              $region59: #{net_forward.1} parent=55 // loop_header_branch
                %523 = sbr.rel (%p520) target = $region63
              $region60: #{net_forward.1} parent=55 // loop_body
                %v527 = vld [vmem:[%s525] sm:$0xff]
                %528 = vst [vmem:[%s526] sm:$0xff] %v527
                %v529 = vld [vmem:[%s525 + $0x8] sm:$0xff]
                %530 = vst [vmem:[%s526 + $0x8] sm:$0xff] %v529
                %v531 = vld [vmem:[%s525 + $0x10] sm:$0xff]
                %532 = vst [vmem:[%s526 + $0x10] sm:$0xff] %v531
                %v533 = vld [vmem:[%s525 + $0x18] sm:$0xff]
                %534 = vst [vmem:[%s526 + $0x18] sm:$0xff] %v533
                %v535 = vld [vmem:[%s525 + $0x20] sm:$0xff]
                %536 = vst [vmem:[%s526 + $0x20] sm:$0xff] %v535
                %s537 = sadd.s32 1, %s524
                %p538 = scmp.ge.s32.totalorder %s537, %s516
                %s539 = scalar_select %p538, 0, %s537
                %s540 = smul.u32 %s539, 40
                %s541 = smul.u32 %s539, 40
                %s542 = scalar_lea.vmem %s496, %s540 [#allocation2]
                %s543 = scalar_lea.vmem %s507, %s541
              $region61: #{net_forward.1} parent=55 // loop_footer
                %s521 = sadd.s32 %s519, 1
              $region62: #{net_forward.1} parent=55 // loop_footer_branch
                %518 = sbr.rel target = $region58
              $region63: #{net_forward.1} parent=55 // loop_exit
                _
              %s544 = sdiv.u32.pop %s503, 5
              %s545 = srem.u32.pop %s503, 5
              %s546 = smul.u32 %s544, 5
              %s547 = smul.u32 8, %s546
              %s548 = scalar_lea.vmem %s496, %s547 [#allocation2]
              %s549 = smul.u32 8, %s546
              %s550 = scalar_lea.vmem %s507, %s549
              // While loop
              $region64: #{net_forward.1} parent=55 // loop_pre_header
                _
              $region65: #{net_forward.1} parent=55 // loop_header
                %s552 = sphi 0, %s554
                %p553 = scmp.ge.s32.totalorder %s552, %s545
                %s557 = sphi 0, %s564
                %s558 = sphi %s548, %s567
                %s559 = sphi %s550, %s568
              $region66: #{net_forward.1} parent=55 // loop_header_branch
                %556 = sbr.rel (%p553) target = $region70
              $region67: #{net_forward.1} parent=55 // loop_body
                %v560 = vld [vmem:[%s558] sm:$0xff]
                %561 = vst [vmem:[%s559] sm:$0xff] %v560
                %s562 = sadd.s32 1, %s557
                %p563 = scmp.ge.s32.totalorder %s562, %s545
                %s564 = scalar_select %p563, 0, %s562
                %s565 = smul.u32 %s564, 8
                %s566 = smul.u32 %s564, 8
                %s567 = scalar_lea.vmem %s548, %s565 [#allocation2]
                %s568 = scalar_lea.vmem %s550, %s566
              $region68: #{net_forward.1} parent=55 // loop_footer
                %s554 = sadd.s32 %s552, 1
              $region69: #{net_forward.1} parent=55 // loop_footer_branch
                %551 = sbr.rel target = $region65
              $region70: #{net_forward.1} parent=55 // loop_exit
                _
            $region56: #{net_forward.1} parent=47 // pred_fallthru
              _
          $region48: #{net_forward.1} parent=43 // pred_fallthru
            _
          %626 = vnop
        $region44: #{net_forward.1} parent=39 // pred_fallthru
          _
      $region40: #{net_forward.1} parent=5 // pred_fallthru
        _
      %p627 = scmp.le.s32.totalorder 2, %s11
      // Predicated region
      $region93: #{net_forward.1} parent=5 // pred_check
        %p628 = pneg %p627
      $region94: #{net_forward.1} parent=5 // pred_check_branch
        %630 = sbr.rel (%p628) target = $region96
      $region95: #{net_forward.1} parent=5 // pred_region
        %s631 = ssub.s32 %s11, 2
        // Predicated region
        $region97: #{net_forward.1} parent=95 // pred_check
          %p632 = pneg %p150
        $region98: #{net_forward.1} parent=95 // pred_check_branch
          %634 = sbr.rel (%p632) target = $region100
        $region99: #{net_forward.1} parent=95 // pred_region
          %s635 = sand.u32 %s135, 1
          %s636 = sand.u32 %s135, 1
          %s637 = smul.addr %s636, 40
          %s638 = scalar_lea.vmem [#allocation2], %s637
        $region100: #{net_forward.1} parent=95 // pred_fallthru
          _
      $region96: #{net_forward.1} parent=5 // pred_fallthru
        _
    $region6: #{net_forward.1} parent=1 // loop_footer
      %s15 = sadd.s32 1, %s11
    $region7: #{net_forward.1} parent=1 // loop_footer_branch
      %10 = sbr.rel target = $region3
    $region8: #{net_forward.1} parent=1 // loop_exit
      _

</llo_original>
